<compile_context>
chip_gen: v6e
topology: v6e:2x2x1
jax: 0.10.0
libtpu: 0.0.40
codegen_flags: <defaults>
</compile_context>

<pallas_src>
import jax
import jax.numpy as jnp
from jax.experimental import pallas as pl
from jax.experimental.pallas import tpu as pltpu


def _recognition_kernel(seq_ref, x_ref, eps_ref,
                        w14_ref, b14_ref, w2_ref, b2_ref, w3_ref, b3_ref,
                        out_ref):
    """One (batch element, time tile) grid step.

    Activations are (features, tile_t): features on sublanes, timesteps on the
    128-lane axis, so every intermediate is lane-dense.
    """
    Tt = x_ref.shape[2]
    H = w2_ref.shape[0]
    L = eps_ref.shape[1]

    b = pl.program_id(0)
    tj = pl.program_id(1)

    # bf16 MXU operands, f32 accumulation; biases added in f32 afterwards.
    x = x_ref[0]                                                       # (D, Tt) bf16
    y14 = jnp.dot(w14_ref[...], x,
                  preferred_element_type=jnp.float32) + b14_ref[...]  # (H+L, Tt) f32
    h1 = jnp.maximum(y14[:H], 0.0)                                     # fc1 + relu
    lb = y14[H:]                                                       # fc4 branch (L, Tt)

    h2 = jnp.maximum(
        jnp.dot(w2_ref[...], h1.astype(jnp.bfloat16),
                preferred_element_type=jnp.float32) + b2_ref[...],
        0.0)                                                           # (H, Tt)

    # fc3 as a single matmul; mu / logvar are cheap sublane slices.
    h3 = jnp.dot(w3_ref[...], h2.astype(jnp.bfloat16),
                 preferred_element_type=jnp.float32) + b3_ref[...]     # (2L, Tt)
    mu = h3[:L]
    lv = h3[L:]

    # eps loaded lazily (shortest live range, not resident across the matmuls);
    # widened to f32 only at the multiply (v5e VPU has no bf16).
    eps = eps_ref[0].astype(jnp.float32)                               # (L, Tt)
    theta = mu + lv * eps
    prod = lb * theta                                                  # (L, Tt)

    # mean over the latent dim == sublane reduce; 1/L folded into one multiply.
    s = jnp.sum(prod, axis=0, keepdims=True) * (1.0 / L)               # (1, Tt)

    # pack/pad mask applied ONCE at the end (mask is {0,1}; requires
    # seq_lengths <= T, same invariant pack_padded_sequence enforces).
    t_idx = tj * Tt + jax.lax.broadcasted_iota(jnp.int32, (1, Tt), 1)
    valid = t_idx < seq_ref[b]
    out_ref[...] = jnp.where(valid, s, 0.0)[None]


def _pick_tile_t(B, T, D, H, L, vmem_budget_bytes):
    """VMEM-budget-driven time-tile size (multiple of 128, or the full T)."""
    # Bytes per timestep column resident in VMEM inside one grid step:
    #   * double-buffered bf16 x / eps stream tiles
    #   * double-buffered f32 output tile
    #   * f32 intermediates (y14, h1/lb, h2, h3, mu/lv/theta/prod), counted
    #     generously since slices may materialize copies.
    per_col = (2 * (D + L) * 2
               + 2 * 4
               + (2 * (H + L) + 2 * H + 6 * L) * 4)
    tile = max(128, vmem_budget_bytes // per_col)
    tile = min(tile, 4096)                     # diminishing returns past this
    if B == 1 and T >= 256:
        # Keep >= 2 time tiles so the "parallel" grid still spans both
        # TensorCores on v7x even without a batch axis to shard.
        tile = min(tile, (T // 2 // 128) * 128)
    if tile >= T:
        return T
    return max(128, (tile // 128) * 128)


def recognition_network(x, seq_lengths, params, eps, *, tile_t=None,
                        vmem_budget_bytes=8 * 1024 * 1024):
    """Pallas implementation of RecognitionNetwork.forward((x, seq_lengths)).

    Returns the full (B, T) output (padded positions are zero).  Callers that
    need PyTorch's pad_packed_sequence length can slice [:, :max(seq_lengths)]
    themselves — no host sync is done here.
    """
    B, T, D = x.shape
    H = params["w1"].shape[1]
    L = params["w4"].shape[1]

    if tile_t is None:
        tile_t = _pick_tile_t(B, T, D, H, L, vmem_budget_bytes)
    grid = (B, pl.cdiv(T, tile_t))

    # bf16 streams presented in the "features on sublanes / timesteps on lanes"
    # layout (one cheap XLA transpose pass, traded for lane-dense activations).
    x_t = x.astype(jnp.bfloat16).transpose(0, 2, 1)        # (B, D, T) bf16
    eps_t = eps.astype(jnp.bfloat16).transpose(0, 2, 1)    # (B, L, T) bf16
    seq = seq_lengths.astype(jnp.int32).reshape(B)         # (B,) int32 -> SMEM

    # Weights: fused fc1|fc4, transposed for the W^T @ X^T contraction, cast to
    # bf16 once (MXU-native).  Biases stay f32 column vectors (added after the
    # f32 accumulation).
    w14t = jnp.concatenate([params["w1"], params["w4"]], axis=1).T.astype(jnp.bfloat16)  # (H+L, D)
    b14c = jnp.concatenate([params["b1"], params["b4"]], axis=1).T                       # (H+L, 1)
    w2t = params["w2"].T.astype(jnp.bfloat16)              # (H, H)
    b2c = params["b2"].T                                   # (H, 1)
    w3t = params["w3"].T.astype(jnp.bfloat16)              # (2L, H)
    b3c = params["b3"].T                                   # (2L, 1)

    out3 = pl.pallas_call(
        _recognition_kernel,
        out_shape=jax.ShapeDtypeStruct((B, 1, T), jnp.float32),
        grid=grid,
        in_specs=[
            pl.BlockSpec(memory_space=pltpu.MemorySpace.SMEM),        # seq_lengths
            pl.BlockSpec((1, D, tile_t), lambda b, j: (b, 0, j)),     # x tile (bf16)
            pl.BlockSpec((1, L, tile_t), lambda b, j: (b, 0, j)),     # eps tile (bf16)
            pl.BlockSpec((H + L, D), lambda b, j: (0, 0)),            # fused fc1|fc4 W^T
            pl.BlockSpec((H + L, 1), lambda b, j: (0, 0)),            # fused fc1|fc4 bias
            pl.BlockSpec((H, H), lambda b, j: (0, 0)),                # fc2 W^T
            pl.BlockSpec((H, 1), lambda b, j: (0, 0)),                # fc2 bias
            pl.BlockSpec((2 * L, H), lambda b, j: (0, 0)),            # fc3 W^T (single matmul)
            pl.BlockSpec((2 * L, 1), lambda b, j: (0, 0)),            # fc3 bias
        ],
        out_specs=pl.BlockSpec((1, 1, tile_t), lambda b, j: (b, 0, j)),
        compiler_params=pltpu.CompilerParams(
            dimension_semantics=("parallel", "parallel"),
            vmem_limit_bytes=32 * 1024 * 1024),
    )(seq, x_t, eps_t, w14t, b14c, w2t, b2c, w3t, b3c)
    return out3.reshape(B, T)


def _reference_f32(x, seq_lengths, params, eps):
    """True-spec pure-f32 reference mirroring the PyTorch forward (same eps)."""
    B, T, _ = x.shape
    L = params["w4"].shape[1]
    mask = (jnp.arange(T)[None, :] < seq_lengths[:, None]).astype(jnp.float32)[..., None]
    h1 = jax.nn.relu(x @ params["w1"] + params["b1"][0])
    h2 = jax.nn.relu(h1 @ params["w2"] + params["b2"][0])
    h3 = h2 @ params["w3"] + params["b3"][0]
    mu = h3[..., :L] * mask
    logvar = h3[..., L:] * mask
    theta = mu + logvar * eps
    lb = (x @ params["w4"] + params["b4"][0]) * mask
    return jnp.mean(lb * theta, axis=-1)        # (B, T)


def _reference_kernel_numerics(x, seq_lengths, params, eps):
    """Reference reproducing the kernel's deliberate bf16-operand numerics."""
    B, T, D = x.shape
    H = params["w1"].shape[1]
    L = params["w4"].shape[1]
    f32 = jnp.float32
    xq = x.astype(jnp.bfloat16).reshape(B * T, D)
    epsq = eps.astype(jnp.bfloat16).astype(f32).reshape(B * T, L)
    w14 = jnp.concatenate([params["w1"], params["w4"]], axis=1).astype(jnp.bfloat16)
    b14 = jnp.concatenate([params["b1"], params["b4"]], axis=1)[0]
    w2 = params["w2"].astype(jnp.bfloat16)
    w3 = params["w3"].astype(jnp.bfloat16)

    y14 = jnp.dot(xq, w14, preferred_element_type=f32) + b14
    h1 = jax.nn.relu(y14[:, :H])
    lb = y14[:, H:]
    h2 = jax.nn.relu(jnp.dot(h1.astype(jnp.bfloat16), w2,
                             preferred_element_type=f32) + params["b2"][0])
    h3 = jnp.dot(h2.astype(jnp.bfloat16), w3,
                 preferred_element_type=f32) + params["b3"][0]
    mu, lv = h3[:, :L], h3[:, L:]
    theta = mu + lv * epsq
    out = jnp.mean(lb * theta, axis=-1).reshape(B, T)
    mask = jnp.arange(T)[None, :] < seq_lengths[:, None]
    return jnp.where(mask, out, 0.0)


if __name__ == "__main__":
    B, T, D, H, L = 2, 8, 16, 32, 8   # batch, seq, input_dim, hidden_size, latent_dim

    key = jax.random.PRNGKey(0)
    ks = jax.random.split(key, 6)
    x = jax.random.normal(ks[0], (B, T, D), jnp.float32)
    seq_list = [8, 5]                  # python ints -> no device sync for t_max
    seq_lengths = jnp.array(seq_list, dtype=jnp.int32)
    # torch.randn_like(logvar): independent normal noise per (b, t, latent) position
    eps = jax.random.normal(ks[1], (B, T, L), jnp.float32)

    def init_linear(k, fan_in, fan_out):
        kw, kb = jax.random.split(k)
        bound = 1.0 / float(jnp.sqrt(fan_in))
        w = jax.random.uniform(kw, (fan_in, fan_out), jnp.float32, -bound, bound)
        b = jax.random.uniform(kb, (1, fan_out), jnp.float32, -bound, bound)
        return w, b

    w1, b1 = init_linear(ks[2], D, H)
    w2, b2 = init_linear(ks[3], H, H)
    w3, b3 = init_linear(ks[4], H, 2 * L)      # fc3: (H, 2L)
    w4, b4 = init_linear(ks[5], D, L)
    params = dict(w1=w1, b1=b1, w2=w2, b2=b2, w3=w3, b3=b3, w4=w4, b4=b4)

    out = recognition_network(x, seq_lengths, params, eps)
    out = jax.block_until_ready(out)

    ref_q = _reference_kernel_numerics(x, seq_lengths, params, eps)
    ref_f32 = _reference_f32(x, seq_lengths, params, eps)

    # pad_packed_sequence returns length == max(seq_lengths); slice on the
    # caller side from host ints (no jax.device_get in the hot path).
    t_max = max(seq_list)
    out_t = out[:, :t_max]

    assert out.shape == (B, T), out.shape
    # Tight parity with the bf16-mirrored reference (same deliberate numerics).
    assert jnp.allclose(out_t, ref_q[:, :t_max], atol=1e-4, rtol=1e-3), \
        "mismatch vs bf16-mirrored reference"
    # Loose parity with the true f32 spec (quantization error is ~1e-3 abs here).
    assert jnp.allclose(out_t, ref_f32[:, :t_max], atol=2e-2, rtol=5e-2), \
        "mismatch vs f32 reference"

    print("KERNEL_OK")
</pallas_src>

<mosaic_0001>
module attributes {stable_mosaic.version = 11 : i64} {
  func.func @_recognition_kernel(%arg0: i32, %arg1: i32, %arg2: memref<2xi32, #tpu.memory_space<smem>>, %arg3: memref<1x16x8xbf16, #tpu.memory_space<vmem>>, %arg4: memref<1x8x8xbf16, #tpu.memory_space<vmem>>, %arg5: memref<40x16xbf16, #tpu.memory_space<vmem>>, %arg6: memref<40x1xf32, #tpu.memory_space<vmem>>, %arg7: memref<32x32xbf16, #tpu.memory_space<vmem>>, %arg8: memref<32x1xf32, #tpu.memory_space<vmem>>, %arg9: memref<16x32xbf16, #tpu.memory_space<vmem>>, %arg10: memref<16x1xf32, #tpu.memory_space<vmem>>, %arg11: memref<1x1x8xf32, #tpu.memory_space<vmem>>) attributes {dimension_semantics = [#tpu.dimension_semantics<parallel>, #tpu.dimension_semantics<parallel>], iteration_bounds = array<i64: 2, 1>, scalar_prefetch = 0 : i64, scratch_operands = 0 : i64, tpu.core_type = #tpu.core_type<tc>, window_params = [{transform_indices = @transform_0, window_bounds = array<i64: 2>}, {transform_indices = @transform_1, window_bounds = array<i64: 1, 16, 8>}, {transform_indices = @transform_2, window_bounds = array<i64: 1, 8, 8>}, {pipeline_mode = #tpu.pipeline_mode<synchronous>, transform_indices = @transform_3, window_bounds = array<i64: 40, 16>}, {pipeline_mode = #tpu.pipeline_mode<synchronous>, transform_indices = @transform_4, window_bounds = array<i64: 40, 1>}, {pipeline_mode = #tpu.pipeline_mode<synchronous>, transform_indices = @transform_5, window_bounds = array<i64: 32, 32>}, {pipeline_mode = #tpu.pipeline_mode<synchronous>, transform_indices = @transform_6, window_bounds = array<i64: 32, 1>}, {pipeline_mode = #tpu.pipeline_mode<synchronous>, transform_indices = @transform_7, window_bounds = array<i64: 16, 32>}, {pipeline_mode = #tpu.pipeline_mode<synchronous>, transform_indices = @transform_8, window_bounds = array<i64: 16, 1>}, {transform_indices = @transform_9, window_bounds = array<i64: 1, 1, 8>}]} {
    %c0 = arith.constant 0 : index
    %c0_0 = arith.constant 0 : index
    %c0_1 = arith.constant 0 : index
    %0 = vector.load %arg3[%c0, %c0_0, %c0_1] : memref<1x16x8xbf16, #tpu.memory_space<vmem>>, vector<1x16x8xbf16>
    %1 = vector.shape_cast %0 : vector<1x16x8xbf16> to vector<16x8xbf16>
    %c0_2 = arith.constant 0 : index
    %c0_3 = arith.constant 0 : index
    %2 = vector.load %arg5[%c0_2, %c0_3] : memref<40x16xbf16, #tpu.memory_space<vmem>>, vector<40x16xbf16>
    %cst = arith.constant dense<0.000000e+00> : vector<40x8xf32>
    %3 = tpu.matmul %2, %1, %cst {dimension_numbers = #tpu.dot_dimension_numbers<[1], [0], [0], [1], [0, 0, 1, 1], [], []>} : vector<40x16xbf16>, vector<16x8xbf16>, vector<40x8xf32> -> vector<40x8xf32>
    %c0_4 = arith.constant 0 : index
    %c0_5 = arith.constant 0 : index
    %4 = vector.load %arg6[%c0_4, %c0_5] : memref<40x1xf32, #tpu.memory_space<vmem>>, vector<40x1xf32>
    %5 = vector.broadcast %4 : vector<40x1xf32> to vector<40x8xf32>
    %6 = arith.addf %3, %5 : vector<40x8xf32>
    %7 = vector.extract_strided_slice %6 {offsets = [0, 0], sizes = [32, 8], strides = [1, 1]} : vector<40x8xf32> to vector<32x8xf32>
    %cst_6 = arith.constant 0.000000e+00 : f32
    %8 = vector.broadcast %cst_6 : f32 to vector<32x8xf32>
    %9 = arith.maximumf %7, %8 : vector<32x8xf32>
    %10 = vector.extract_strided_slice %6 {offsets = [32, 0], sizes = [8, 8], strides = [1, 1]} : vector<40x8xf32> to vector<8x8xf32>
    %c0_7 = arith.constant 0 : index
    %c0_8 = arith.constant 0 : index
    %11 = vector.load %arg7[%c0_7, %c0_8] : memref<32x32xbf16, #tpu.memory_space<vmem>>, vector<32x32xbf16>
    %12 = arith.truncf %9 : vector<32x8xf32> to vector<32x8xbf16>
    %cst_9 = arith.constant dense<0.000000e+00> : vector<32x8xf32>
    %13 = tpu.matmul %11, %12, %cst_9 {dimension_numbers = #tpu.dot_dimension_numbers<[1], [0], [0], [1], [0, 0, 1, 1], [], []>} : vector<32x32xbf16>, vector<32x8xbf16>, vector<32x8xf32> -> vector<32x8xf32>
    %c0_10 = arith.constant 0 : index
    %c0_11 = arith.constant 0 : index
    %14 = vector.load %arg8[%c0_10, %c0_11] : memref<32x1xf32, #tpu.memory_space<vmem>>, vector<32x1xf32>
    %15 = vector.broadcast %14 : vector<32x1xf32> to vector<32x8xf32>
    %16 = arith.addf %13, %15 : vector<32x8xf32>
    %cst_12 = arith.constant 0.000000e+00 : f32
    %17 = vector.broadcast %cst_12 : f32 to vector<32x8xf32>
    %18 = arith.maximumf %16, %17 : vector<32x8xf32>
    %c0_13 = arith.constant 0 : index
    %c0_14 = arith.constant 0 : index
    %19 = vector.load %arg9[%c0_13, %c0_14] : memref<16x32xbf16, #tpu.memory_space<vmem>>, vector<16x32xbf16>
    %20 = arith.truncf %18 : vector<32x8xf32> to vector<32x8xbf16>
    %cst_15 = arith.constant dense<0.000000e+00> : vector<16x8xf32>
    %21 = tpu.matmul %19, %20, %cst_15 {dimension_numbers = #tpu.dot_dimension_numbers<[1], [0], [0], [1], [0, 0, 1, 1], [], []>} : vector<16x32xbf16>, vector<32x8xbf16>, vector<16x8xf32> -> vector<16x8xf32>
    %c0_16 = arith.constant 0 : index
    %c0_17 = arith.constant 0 : index
    %22 = vector.load %arg10[%c0_16, %c0_17] : memref<16x1xf32, #tpu.memory_space<vmem>>, vector<16x1xf32>
    %23 = vector.broadcast %22 : vector<16x1xf32> to vector<16x8xf32>
    %24 = arith.addf %21, %23 : vector<16x8xf32>
    %25 = vector.extract_strided_slice %24 {offsets = [0, 0], sizes = [8, 8], strides = [1, 1]} : vector<16x8xf32> to vector<8x8xf32>
    %26 = vector.extract_strided_slice %24 {offsets = [8, 0], sizes = [8, 8], strides = [1, 1]} : vector<16x8xf32> to vector<8x8xf32>
    %c0_18 = arith.constant 0 : index
    %c0_19 = arith.constant 0 : index
    %c0_20 = arith.constant 0 : index
    %27 = vector.load %arg4[%c0_18, %c0_19, %c0_20] : memref<1x8x8xbf16, #tpu.memory_space<vmem>>, vector<1x8x8xbf16>
    %28 = vector.shape_cast %27 : vector<1x8x8xbf16> to vector<8x8xbf16>
    %29 = arith.extf %28 : vector<8x8xbf16> to vector<8x8xf32>
    %30 = arith.mulf %26, %29 : vector<8x8xf32>
    %31 = arith.addf %25, %30 : vector<8x8xf32>
    %32 = arith.mulf %10, %31 : vector<8x8xf32>
    %cst_21 = arith.constant dense<0.000000e+00> : vector<8xf32>
    %33 = vector.multi_reduction <add>, %32, %cst_21 [0] : vector<8x8xf32> to vector<8xf32>
    %34 = vector.shape_cast %33 : vector<8xf32> to vector<1x8xf32>
    %cst_22 = arith.constant 1.250000e-01 : f32
    %35 = vector.broadcast %cst_22 : f32 to vector<1x8xf32>
    %36 = arith.mulf %34, %35 : vector<1x8xf32>
    %c8_i32 = arith.constant 8 : i32
    %37 = arith.muli %arg1, %c8_i32 : i32
    %38 = tpu.iota {dimensions = array<i32: 1>} : vector<1x8xi32>
    %39 = vector.broadcast %37 : i32 to vector<1x8xi32>
    %40 = arith.addi %39, %38 : vector<1x8xi32>
    %41 = arith.index_cast %arg0 : i32 to index
    %42 = memref.load %arg2[%41] : memref<2xi32, #tpu.memory_space<smem>>
    %43 = vector.broadcast %42 : i32 to vector<1x8xi32>
    %44 = arith.cmpi slt, %40, %43 : vector<1x8xi32>
    %cst_23 = arith.constant 0.000000e+00 : f32
    %45 = vector.broadcast %cst_23 : f32 to vector<1x8xf32>
    %46 = arith.select %44, %36, %45 : vector<1x8xi1>, vector<1x8xf32>
    %47 = vector.shape_cast %46 : vector<1x8xf32> to vector<1x1x8xf32>
    %c0_24 = arith.constant 0 : index
    %c0_25 = arith.constant 0 : index
    %c0_26 = arith.constant 0 : index
    %48 = vector.load %arg11[%c0_24, %c0_25, %c0_26] : memref<1x1x8xf32, #tpu.memory_space<vmem>>, vector<1x1x8xf32>
    tpu.vector_store %arg11[%c0_24, %c0_25, %c0_26], %47 {strides = array<i32>} : memref<1x1x8xf32, #tpu.memory_space<vmem>>, vector<1x1x8xf32>,
    return
  }
  func.func @transform_0(%arg0: i32, %arg1: i32) -> i32 {
    %c0_i32 = arith.constant 0 : i32
    %c0_i32_0 = arith.constant 0 : i32
    return %c0_i32 : i32
  }
  func.func @transform_1(%arg0: i32, %arg1: i32) -> (i32, i32, i32) {
    %c0_i32 = arith.constant 0 : i32
    %c0_i32_0 = arith.constant 0 : i32
    return %arg0, %c0_i32, %arg1 : i32, i32, i32
  }
  func.func @transform_2(%arg0: i32, %arg1: i32) -> (i32, i32, i32) {
    %c0_i32 = arith.constant 0 : i32
    %c0_i32_0 = arith.constant 0 : i32
    return %arg0, %c0_i32, %arg1 : i32, i32, i32
  }
  func.func @transform_3(%arg0: i32, %arg1: i32) -> (i32, i32) {
    %c0_i32 = arith.constant 0 : i32
    %c0_i32_0 = arith.constant 0 : i32
    %c0_i32_1 = arith.constant 0 : i32
    return %c0_i32, %c0_i32_0 : i32, i32
  }
  func.func @transform_4(%arg0: i32, %arg1: i32) -> (i32, i32) {
    %c0_i32 = arith.constant 0 : i32
    %c0_i32_0 = arith.constant 0 : i32
    %c0_i32_1 = arith.constant 0 : i32
    return %c0_i32, %c0_i32_0 : i32, i32
  }
  func.func @transform_5(%arg0: i32, %arg1: i32) -> (i32, i32) {
    %c0_i32 = arith.constant 0 : i32
    %c0_i32_0 = arith.constant 0 : i32
    %c0_i32_1 = arith.constant 0 : i32
    return %c0_i32, %c0_i32_0 : i32, i32
  }
  func.func @transform_6(%arg0: i32, %arg1: i32) -> (i32, i32) {
    %c0_i32 = arith.constant 0 : i32
    %c0_i32_0 = arith.constant 0 : i32
    %c0_i32_1 = arith.constant 0 : i32
    return %c0_i32, %c0_i32_0 : i32, i32
  }
  func.func @transform_7(%arg0: i32, %arg1: i32) -> (i32, i32) {
    %c0_i32 = arith.constant 0 : i32
    %c0_i32_0 = arith.constant 0 : i32
    %c0_i32_1 = arith.constant 0 : i32
    return %c0_i32, %c0_i32_0 : i32, i32
  }
  func.func @transform_8(%arg0: i32, %arg1: i32) -> (i32, i32) {
    %c0_i32 = arith.constant 0 : i32
    %c0_i32_0 = arith.constant 0 : i32
    %c0_i32_1 = arith.constant 0 : i32
    return %c0_i32, %c0_i32_0 : i32, i32
  }
  func.func @transform_9(%arg0: i32, %arg1: i32) -> (i32, i32, i32) {
    %c0_i32 = arith.constant 0 : i32
    %c0_i32_0 = arith.constant 0 : i32
    return %arg0, %c0_i32, %arg1 : i32, i32, i32
  }
}

</mosaic_0001>

<llo_original>
// kernel: tpu_custom_call.1
$region0: #{tpu_custom_call.1}
  #allocation0 [shape = 'u32[]', space=smem, size = 0x4, offset = 0x4, fixed_abs, tag = 'smem constant byte address 0x4 - core index']
  #allocation1 [shape = 'u32[144,128]{1,0:T(1,128)}', space=vmem, size = 0x12000, scoped, tag = 'internal scratch']
  %s0 = inlined_call_operand.vmem [shape: s32[2], index: 0, kind: input, shape index: {}]
  %s1 = inlined_call_operand.vmem [shape: bf16[2,16,8], index: 1, kind: input, shape index: {}]
  %s2 = inlined_call_operand.vmem [shape: bf16[2,8,8], index: 2, kind: input, shape index: {}]
  %s3 = inlined_call_operand.vmem [shape: bf16[40,16], index: 3, kind: input, shape index: {}]
  %s4 = inlined_call_operand.vmem [shape: f32[40,1], index: 4, kind: input, shape index: {}]
  %s5 = inlined_call_operand.vmem [shape: bf16[32,32], index: 5, kind: input, shape index: {}]
  %s6 = inlined_call_operand.vmem [shape: f32[32,1], index: 6, kind: input, shape index: {}]
  %s7 = inlined_call_operand.vmem [shape: bf16[16,32], index: 7, kind: input, shape index: {}]
  %s8 = inlined_call_operand.vmem [shape: f32[16,1], index: 8, kind: input, shape index: {}]
  %s9 = inlined_call_operand.hbm [shape: f32[2,1,8], index: 9, kind: output, shape index: {}]
  %s10 = sld [smem:[#allocation0]]
  $region73: #{tpu_custom_call.1} parent=0
    _
  %s12 = ssub.s32 1, %s10
  %s13 = scalar_select 0, %s12, %s10
  $region1: #{tpu_custom_call.1} parent=0
    #allocation2 [shape = 'u8[512]{0}', space=smem, size = 0x200, scoped, tag = 'input window, operand 0, single buffered']
    #allocation3 [shape = 's32[2]{0}', space=sflag, size = 0x8, scoped, tag = 'scoped memory for tpu_custom_call.1']
    #allocation4 [shape = 's32[2]{0}', space=sflag, size = 0x8, scoped, tag = 'scoped memory for tpu_custom_call.1']
    #allocation5 [shape = 'u8[1024]{0}', space=vmem, size = 0x400, scoped, tag = 'output window, operand 0']
    %14 = vsyncpa [#allocation4], 0
    %15 = vsyncpa [#allocation3], 0
    %s16 = scalar_lea.sflag [#allocation3], 1
    %17 = vsyncpa %s16, 0
    loop: start=0, step=1, limit=4
    $region2: #{tpu_custom_call.1} parent=1 // loop_pre_header
      _
    $region3: #{tpu_custom_call.1} parent=1 // loop_header
      %s19 = sphi 0, %s23
      %p20 = scmp.ge.s32.totalorder %s19, 4
      %s26 = sphi 0, %s38
      %s27 = sphi 0, %s34
      %s28 = sphi 0, %s26
      %s29 = sphi 0, %s27
      %s30 = sphi 0, %s28
      %s31 = sphi 0, %s29
      %s39 = sphi 0, %s39
      %s41 = sphi 0, %s39
      %s42 = sphi 0, %s41
      %s56 = sphi 0, %s42
      %s64 = sphi 0, %s66
      %s67 = sphi 0, %s64
      %s68 = sphi 0, %s67
      %s84 = sphi 0, %s68
      %s92 = sphi 0, %s94
      %s95 = sphi 0, %s92
      %s96 = sphi 0, %s95
      %s112 = sphi 0, %s96
      %s116 = sphi 0, %s116
      %s118 = sphi 0, %s116
      %s119 = sphi 0, %s118
      %s133 = sphi 0, %s119
      %s137 = sphi 0, %s137
      %s139 = sphi 0, %s137
      %s140 = sphi 0, %s139
      %s154 = sphi 0, %s140
      %s158 = sphi 0, %s158
      %s160 = sphi 0, %s158
      %s161 = sphi 0, %s160
      %s175 = sphi 0, %s161
      %s179 = sphi 0, %s179
      %s181 = sphi 0, %s179
      %s182 = sphi 0, %s181
      %s196 = sphi 0, %s182
      %s200 = sphi 0, %s200
      %s202 = sphi 0, %s200
      %s203 = sphi 0, %s202
      %s217 = sphi 0, %s203
      %s221 = sphi 0, %s221
      %s223 = sphi 0, %s221
      %s224 = sphi 0, %s223
      %s238 = sphi 0, %s224
      %s246 = sphi 0, %s248
      %s249 = sphi 0, %s246
      %s250 = sphi 0, %s249
      %s266 = sphi 0, %s250
    $region4: #{tpu_custom_call.1} parent=1 // loop_header_branch
      %22 = sbr.rel (%p20) target = $region8
    $region5: #{tpu_custom_call.1} parent=1 // loop_body
      %s24 = ssub.s32 %s19, 1
      %s25 = ssub.s32 %s19, 2
      %s32 = sadd.s32 1, %s27
      %p33 = scmp.ge.s32.totalorder %s32, 1
      %s34 = scalar_select %p33, 0, %s32
      %s35 = sadd.s32 1, %s26
      %s36 = scalar_select %p33, %s35, %s26
      %p37 = scmp.ge.s32.totalorder %s36, 2
      %s38 = scalar_select %p37, 0, %s36
      %s40 = sadd.s32 %s39, 1
      %p43 = scmp.eq.s32.totalorder %s19, 1
      %p44 = scmp.ne.s32.totalorder %s39, %s41
      %p45 = scmp.eq.s32.totalorder %s19, 0
      %p46 = por %p44, %p45
      %p47 = scmp.ne.s32.totalorder %s39, %s41
      %p48 = scmp.eq.s32.totalorder %s24, 1
      %p49 = por %p47, %p48
      %p50 = scmp.ne.s32.totalorder %s41, %s42
      %p51 = scmp.eq.s32.totalorder %s24, 0
      %p52 = por %p50, %p51
      %p53 = scmp.ne.s32.totalorder %s41, %s42
      %p54 = scmp.eq.s32.totalorder %s25, 1
      %p55 = por %p53, %p54
      %p57 = scmp.ne.s32.totalorder %s42, %s56
      %p58 = scmp.eq.s32.totalorder %s25, 0
      %p59 = por %p57, %p58
      %s60 = ssub.s32 %s26, %s38
      %s61 = ssub.s32 %s27, %s34
      %s62 = sor.u32 %s60, %s61
      %p63 = scmp.eq.s32.totalorder %s62, 0
      %s65 = sadd.s32 %s64, 1
      %s66 = scalar_select %p63, %s64, %s65
      %p69 = pneg %p63
      %p70 = scmp.eq.s32.totalorder %s19, 1
      %p71 = por %p69, %p70
      %p72 = scmp.ne.s32.totalorder %s64, %s67
      %p73 = scmp.eq.s32.totalorder %s19, 0
      %p74 = por %p72, %p73
      %p75 = scmp.ne.s32.totalorder %s64, %s67
      %p76 = scmp.eq.s32.totalorder %s24, 1
      %p77 = por %p75, %p76
      %p78 = scmp.ne.s32.totalorder %s67, %s68
      %p79 = scmp.eq.s32.totalorder %s24, 0
      %p80 = por %p78, %p79
      %p81 = scmp.ne.s32.totalorder %s67, %s68
      %p82 = scmp.eq.s32.totalorder %s25, 1
      %p83 = por %p81, %p82
      %p85 = scmp.ne.s32.totalorder %s68, %s84
      %p86 = scmp.eq.s32.totalorder %s25, 0
      %p87 = por %p85, %p86
      %s88 = ssub.s32 %s26, %s38
      %s89 = ssub.s32 %s27, %s34
      %s90 = sor.u32 %s88, %s89
      %p91 = scmp.eq.s32.totalorder %s90, 0
      %s93 = sadd.s32 %s92, 1
      %s94 = scalar_select %p91, %s92, %s93
      %p97 = pneg %p91
      %p98 = scmp.eq.s32.totalorder %s19, 1
      %p99 = por %p97, %p98
      %p100 = scmp.ne.s32.totalorder %s92, %s95
      %p101 = scmp.eq.s32.totalorder %s19, 0
      %p102 = por %p100, %p101
      %p103 = scmp.ne.s32.totalorder %s92, %s95
      %p104 = scmp.eq.s32.totalorder %s24, 1
      %p105 = por %p103, %p104
      %p106 = scmp.ne.s32.totalorder %s95, %s96
      %p107 = scmp.eq.s32.totalorder %s24, 0
      %p108 = por %p106, %p107
      %p109 = scmp.ne.s32.totalorder %s95, %s96
      %p110 = scmp.eq.s32.totalorder %s25, 1
      %p111 = por %p109, %p110
      %p113 = scmp.ne.s32.totalorder %s96, %s112
      %p114 = scmp.eq.s32.totalorder %s25, 0
      %p115 = por %p113, %p114
      %s117 = sadd.s32 %s116, 1
      %p120 = scmp.eq.s32.totalorder %s19, 1
      %p121 = scmp.ne.s32.totalorder %s116, %s118
      %p122 = scmp.eq.s32.totalorder %s19, 0
      %p123 = por %p121, %p122
      %p124 = scmp.ne.s32.totalorder %s116, %s118
      %p125 = scmp.eq.s32.totalorder %s24, 1
      %p126 = por %p124, %p125
      %p127 = scmp.ne.s32.totalorder %s118, %s119
      %p128 = scmp.eq.s32.totalorder %s24, 0
      %p129 = por %p127, %p128
      %p130 = scmp.ne.s32.totalorder %s118, %s119
      %p131 = scmp.eq.s32.totalorder %s25, 1
      %p132 = por %p130, %p131
      %p134 = scmp.ne.s32.totalorder %s119, %s133
      %p135 = scmp.eq.s32.totalorder %s25, 0
      %p136 = por %p134, %p135
      %s138 = sadd.s32 %s137, 1
      %p141 = scmp.eq.s32.totalorder %s19, 1
      %p142 = scmp.ne.s32.totalorder %s137, %s139
      %p143 = scmp.eq.s32.totalorder %s19, 0
      %p144 = por %p142, %p143
      %p145 = scmp.ne.s32.totalorder %s137, %s139
      %p146 = scmp.eq.s32.totalorder %s24, 1
      %p147 = por %p145, %p146
      %p148 = scmp.ne.s32.totalorder %s139, %s140
      %p149 = scmp.eq.s32.totalorder %s24, 0
      %p150 = por %p148, %p149
      %p151 = scmp.ne.s32.totalorder %s139, %s140
      %p152 = scmp.eq.s32.totalorder %s25, 1
      %p153 = por %p151, %p152
      %p155 = scmp.ne.s32.totalorder %s140, %s154
      %p156 = scmp.eq.s32.totalorder %s25, 0
      %p157 = por %p155, %p156
      %s159 = sadd.s32 %s158, 1
      %p162 = scmp.eq.s32.totalorder %s19, 1
      %p163 = scmp.ne.s32.totalorder %s158, %s160
      %p164 = scmp.eq.s32.totalorder %s19, 0
      %p165 = por %p163, %p164
      %p166 = scmp.ne.s32.totalorder %s158, %s160
      %p167 = scmp.eq.s32.totalorder %s24, 1
      %p168 = por %p166, %p167
      %p169 = scmp.ne.s32.totalorder %s160, %s161
      %p170 = scmp.eq.s32.totalorder %s24, 0
      %p171 = por %p169, %p170
      %p172 = scmp.ne.s32.totalorder %s160, %s161
      %p173 = scmp.eq.s32.totalorder %s25, 1
      %p174 = por %p172, %p173
      %p176 = scmp.ne.s32.totalorder %s161, %s175
      %p177 = scmp.eq.s32.totalorder %s25, 0
      %p178 = por %p176, %p177
      %s180 = sadd.s32 %s179, 1
      %p183 = scmp.eq.s32.totalorder %s19, 1
      %p184 = scmp.ne.s32.totalorder %s179, %s181
      %p185 = scmp.eq.s32.totalorder %s19, 0
      %p186 = por %p184, %p185
      %p187 = scmp.ne.s32.totalorder %s179, %s181
      %p188 = scmp.eq.s32.totalorder %s24, 1
      %p189 = por %p187, %p188
      %p190 = scmp.ne.s32.totalorder %s181, %s182
      %p191 = scmp.eq.s32.totalorder %s24, 0
      %p192 = por %p190, %p191
      %p193 = scmp.ne.s32.totalorder %s181, %s182
      %p194 = scmp.eq.s32.totalorder %s25, 1
      %p195 = por %p193, %p194
      %p197 = scmp.ne.s32.totalorder %s182, %s196
      %p198 = scmp.eq.s32.totalorder %s25, 0
      %p199 = por %p197, %p198
      %s201 = sadd.s32 %s200, 1
      %p204 = scmp.eq.s32.totalorder %s19, 1
      %p205 = scmp.ne.s32.totalorder %s200, %s202
      %p206 = scmp.eq.s32.totalorder %s19, 0
      %p207 = por %p205, %p206
      %p208 = scmp.ne.s32.totalorder %s200, %s202
      %p209 = scmp.eq.s32.totalorder %s24, 1
      %p210 = por %p208, %p209
      %p211 = scmp.ne.s32.totalorder %s202, %s203
      %p212 = scmp.eq.s32.totalorder %s24, 0
      %p213 = por %p211, %p212
      %p214 = scmp.ne.s32.totalorder %s202, %s203
      %p215 = scmp.eq.s32.totalorder %s25, 1
      %p216 = por %p214, %p215
      %p218 = scmp.ne.s32.totalorder %s203, %s217
      %p219 = scmp.eq.s32.totalorder %s25, 0
      %p220 = por %p218, %p219
      %s222 = sadd.s32 %s221, 1
      %p225 = scmp.eq.s32.totalorder %s19, 1
      %p226 = scmp.ne.s32.totalorder %s221, %s223
      %p227 = scmp.eq.s32.totalorder %s19, 0
      %p228 = por %p226, %p227
      %p229 = scmp.ne.s32.totalorder %s221, %s223
      %p230 = scmp.eq.s32.totalorder %s24, 1
      %p231 = por %p229, %p230
      %p232 = scmp.ne.s32.totalorder %s223, %s224
      %p233 = scmp.eq.s32.totalorder %s24, 0
      %p234 = por %p232, %p233
      %p235 = scmp.ne.s32.totalorder %s223, %s224
      %p236 = scmp.eq.s32.totalorder %s25, 1
      %p237 = por %p235, %p236
      %p239 = scmp.ne.s32.totalorder %s224, %s238
      %p240 = scmp.eq.s32.totalorder %s25, 0
      %p241 = por %p239, %p240
      %s242 = ssub.s32 %s26, %s38
      %s243 = ssub.s32 %s27, %s34
      %s244 = sor.u32 %s242, %s243
      %p245 = scmp.eq.s32.totalorder %s244, 0
      %s247 = sadd.s32 %s246, 1
      %s248 = scalar_select %p245, %s246, %s247
      %p251 = pneg %p245
      %p252 = scmp.eq.s32.totalorder %s19, 1
      %p253 = por %p251, %p252
      %p254 = scmp.ne.s32.totalorder %s246, %s249
      %p255 = scmp.eq.s32.totalorder %s19, 0
      %p256 = por %p254, %p255
      %p257 = scmp.ne.s32.totalorder %s246, %s249
      %p258 = scmp.eq.s32.totalorder %s24, 1
      %p259 = por %p257, %p258
      %p260 = scmp.ne.s32.totalorder %s249, %s250
      %p261 = scmp.eq.s32.totalorder %s24, 0
      %p262 = por %p260, %p261
      %p263 = scmp.ne.s32.totalorder %s249, %s250
      %p264 = scmp.eq.s32.totalorder %s25, 1
      %p265 = por %p263, %p264
      %p267 = scmp.ne.s32.totalorder %s250, %s266
      %p268 = scmp.eq.s32.totalorder %s25, 0
      %p269 = por %p267, %p268
      %p270 = scmp.le.s32.totalorder 1, %s19
      %p271 = scmp.lt.s32.totalorder %s19, 3
      %p272 = pnand %p270, %p271
      %p273 = pneg %p272
      // Predicated region
      $region9: #{tpu_custom_call.1} parent=5 // pred_check
        _
      $region10: #{tpu_custom_call.1} parent=5 // pred_check_branch
        %275 = sbr.rel (%p272) target = $region12
      $region11: #{tpu_custom_call.1} parent=5 // pred_region
        %s276 = ssub.s32 %s19, 1
        // Predicated region
        $region13: #{tpu_custom_call.1} parent=11 // pred_check
          %p277 = pneg %p52
        $region14: #{tpu_custom_call.1} parent=11 // pred_check_branch
          %279 = sbr.rel (%p277) target = $region16
        $region15: #{tpu_custom_call.1} parent=11 // pred_region
          %s281 = ssub.s32 16, 16
          %282 = vsyncadd [#allocation4], %s281
          %s284 = sshll.u32 %s0, 4
          %s285 = int_to_ptr.vmem [resolvable:$true] %s284
          %287 = dma.vmem_to_smem %s285, 16, [#allocation2], [#allocation4]
        $region16: #{tpu_custom_call.1} parent=11 // pred_fallthru
          _
        // Predicated region
        $region17: #{tpu_custom_call.1} parent=11 // pred_check
          %p288 = pneg %p129
        $region18: #{tpu_custom_call.1} parent=11 // pred_check_branch
          %290 = sbr.rel (%p288) target = $region20
        $region19: #{tpu_custom_call.1} parent=11 // pred_region
          _
        $region20: #{tpu_custom_call.1} parent=11 // pred_fallthru
          _
        // Predicated region
        $region21: #{tpu_custom_call.1} parent=11 // pred_check
          %p291 = pneg %p150
        $region22: #{tpu_custom_call.1} parent=11 // pred_check_branch
          %293 = sbr.rel (%p291) target = $region24
        $region23: #{tpu_custom_call.1} parent=11 // pred_region
          _
        $region24: #{tpu_custom_call.1} parent=11 // pred_fallthru
          _
        // Predicated region
        $region25: #{tpu_custom_call.1} parent=11 // pred_check
          %p294 = pneg %p171
        $region26: #{tpu_custom_call.1} parent=11 // pred_check_branch
          %296 = sbr.rel (%p294) target = $region28
        $region27: #{tpu_custom_call.1} parent=11 // pred_region
          _
        $region28: #{tpu_custom_call.1} parent=11 // pred_fallthru
          _
        // Predicated region
        $region29: #{tpu_custom_call.1} parent=11 // pred_check
          %p297 = pneg %p192
        $region30: #{tpu_custom_call.1} parent=11 // pred_check_branch
          %299 = sbr.rel (%p297) target = $region32
        $region31: #{tpu_custom_call.1} parent=11 // pred_region
          _
        $region32: #{tpu_custom_call.1} parent=11 // pred_fallthru
          _
        // Predicated region
        $region33: #{tpu_custom_call.1} parent=11 // pred_check
          %p300 = pneg %p213
        $region34: #{tpu_custom_call.1} parent=11 // pred_check_branch
          %302 = sbr.rel (%p300) target = $region36
        $region35: #{tpu_custom_call.1} parent=11 // pred_region
          _
        $region36: #{tpu_custom_call.1} parent=11 // pred_fallthru
          _
        // Predicated region
        $region37: #{tpu_custom_call.1} parent=11 // pred_check
          %p303 = pneg %p234
        $region38: #{tpu_custom_call.1} parent=11 // pred_check_branch
          %305 = sbr.rel (%p303) target = $region40
        $region39: #{tpu_custom_call.1} parent=11 // pred_region
          _
        $region40: #{tpu_custom_call.1} parent=11 // pred_fallthru
          _
      $region12: #{tpu_custom_call.1} parent=5 // pred_fallthru
        _
      %p306 = scmp.lt.s32.totalorder %s19, 2
      // Predicated region
      $region41: #{tpu_custom_call.1} parent=5 // pred_check
        %p307 = pneg %p306
      $region42: #{tpu_custom_call.1} parent=5 // pred_check_branch
        %309 = sbr.rel (%p307) target = $region44
      $region43: #{tpu_custom_call.1} parent=5 // pred_region
        // Predicated region
        $region45: #{tpu_custom_call.1} parent=43 // pred_check
          %p310 = pneg %p74
        $region46: #{tpu_custom_call.1} parent=43 // pred_check_branch
          %312 = sbr.rel (%p310) target = $region48
        $region47: #{tpu_custom_call.1} parent=43 // pred_region
          %p313 = scmp.lt.s32.totalorder %s26, 1
          %s314 = scalar_select %p313, %s26, 1
          %p315 = scmp.lt.s32.totalorder %s27, 0
          %s316 = scalar_select %p315, %s27, 0
          %s317 = smul.addr %s314, 2
          %s318 = sadd.s32 %s316, %s317
          %s319 = smul.addr %s318, 4
          %s320 = scalar_lea.vmem %s1, %s319
        $region48: #{tpu_custom_call.1} parent=43 // pred_fallthru
          _
        // Predicated region
        $region49: #{tpu_custom_call.1} parent=43 // pred_check
          %p321 = pneg %p102
        $region50: #{tpu_custom_call.1} parent=43 // pred_check_branch
          %323 = sbr.rel (%p321) target = $region52
        $region51: #{tpu_custom_call.1} parent=43 // pred_region
          %p324 = scmp.lt.s32.totalorder %s26, 1
          %s325 = scalar_select %p324, %s26, 1
          %p326 = scmp.lt.s32.totalorder %s27, 0
          %s327 = scalar_select %p326, %s27, 0
          %s328 = sadd.s32 %s327, %s325
          %s329 = smul.addr %s328, 4
          %s330 = scalar_lea.vmem %s2, %s329
        $region52: #{tpu_custom_call.1} parent=43 // pred_fallthru
          _
      $region44: #{tpu_custom_call.1} parent=5 // pred_fallthru
        _
      %p331 = scmp.le.s32.totalorder 1, %s19
      %p332 = scmp.lt.s32.totalorder %s19, 3
      %p333 = pnand %p331, %p332
      %p334 = pneg %p333
      // Predicated region
      $region53: #{tpu_custom_call.1} parent=5 // pred_check
        _
      $region54: #{tpu_custom_call.1} parent=5 // pred_check_branch
        %336 = sbr.rel (%p333) target = $region56
      $region55: #{tpu_custom_call.1} parent=5 // pred_region
        %s337 = ssub.s32 %s19, 1
        // Predicated region
        $region57: #{tpu_custom_call.1} parent=55 // pred_check
          %p338 = pneg %p52
        $region58: #{tpu_custom_call.1} parent=55 // pred_check_branch
          %340 = sbr.rel (%p338) target = $region60
        $region59: #{tpu_custom_call.1} parent=55 // pred_region
          %341 = dma.done [#allocation4], 16
        $region60: #{tpu_custom_call.1} parent=55 // pred_fallthru
          _
        %342 = sfence
        %p343 = pneg %p52
        %p344 = pneg %p49
        %p345 = scmp.lt.s32.totalorder %s28, 1
        %s346 = scalar_select %p345, %s28, 1
        %p347 = scmp.lt.s32.totalorder %s29, 0
        %s348 = scalar_select %p347, %s29, 0
        %s349 = smul.addr %s346, 2
        %s350 = sadd.s32 %s348, %s349
        %s351 = smul.addr %s350, 4
        %s352 = scalar_lea.vmem %s1, %s351
        %p353 = pneg %p80
        %p354 = pneg %p77
        %p355 = scmp.lt.s32.totalorder %s28, 1
        %s356 = scalar_select %p355, %s28, 1
        %p357 = scmp.lt.s32.totalorder %s29, 0
        %s358 = scalar_select %p357, %s29, 0
        %s359 = sadd.s32 %s358, %s356
        %s360 = smul.addr %s359, 4
        %s361 = scalar_lea.vmem %s2, %s360
        %p362 = pneg %p108
        %p363 = pneg %p105
        %p364 = pneg %p129
        %p365 = pneg %p126
        %p366 = pneg %p150
        %p367 = pneg %p147
        %p368 = pneg %p171
        %p369 = pneg %p168
        %p370 = pneg %p192
        %p371 = pneg %p189
        %p372 = pneg %p213
        %p373 = pneg %p210
        %p374 = pneg %p234
        %p375 = pneg %p231
        %p376 = pneg %p262
        %p377 = pneg %p259
        %s378 = sand.u32 %s249, 1
        %s379 = scalar_lea.sflag [#allocation3], %s378
        %s380 = sand.u32 %s249, 1
        %s381 = scalar_lea.vmem [#allocation5], %s380
        %p382 = scmp.lt.s32.totalorder %s28, 1
        %s383 = scalar_select %p382, %s28, 1
        %p384 = scmp.lt.s32.totalorder %s29, 0
        %s385 = scalar_select %p384, %s29, 0
        %s386 = smul.addr %s383, 2
        %s387 = sadd.s32 %s385, %s386
        %s388 = smul.addr %s387, 4
        %s389 = scalar_lea.vmem %s1, %s388
        %p390 = scmp.lt.s32.totalorder %s28, 1
        %s391 = scalar_select %p390, %s28, 1
        %p392 = scmp.lt.s32.totalorder %s29, 0
        %s393 = scalar_select %p392, %s29, 0
        %s394 = sadd.s32 %s393, %s391
        %s395 = smul.addr %s394, 4
        %s396 = scalar_lea.vmem %s2, %s395
        %v398 = vld [vmem:[%s389] sm:$0xf]
        %v399 = vld [vmem:[%s389 + $0x4] sm:$0xf]
        %v400 = vld [vmem:[%s3] sm:$0xf]
        %v401 = vld [vmem:[%s3 + $0x4] sm:$0xf]
        %v402 = vld [vmem:[%s3 + $0x8] sm:$0xf]
        %v403 = vld [vmem:[%s3 + $0xc] sm:$0xf]
        %v404 = vld [vmem:[%s3 + $0x10] sm:$0xf]
        %v405 = vld [vmem:[%s4] sm:$0xff]
        %v406 = vld [vmem:[%s4 + $0x8] sm:$0xff]
        %v407 = vld [vmem:[%s4 + $0x10] sm:$0xff]
        %v408 = vld [vmem:[%s4 + $0x18] sm:$0xff]
        %v409 = vld [vmem:[%s4 + $0x20] sm:$0xff]
        %411 = vset.pattern.permute.xlu0 0
        %412 = vperm.xlu0 %411, %v405
        %v413 = vpop.permute.xlu0 %412
        %416 = vset.pattern.permute.xlu0 0
        %417 = vperm.xlu0 %416, %v406
        %v418 = vpop.permute.xlu0 %417
        %421 = vset.pattern.permute.xlu0 0
        %422 = vperm.xlu0 %421, %v407
        %v423 = vpop.permute.xlu0 %422
        %426 = vset.pattern.permute.xlu0 0
        %427 = vperm.xlu0 %426, %v408
        %v428 = vpop.permute.xlu0 %427
        %431 = vset.pattern.permute.xlu0 0
        %432 = vperm.xlu0 %431, %v409
        %v433 = vpop.permute.xlu0 %432
        %v440 = vunpack.c.l.b16 %v400
        %v441 = vunpack.c.l.b16 %v401
        %v442 = vunpack.c.l.b16 %v402
        %v443 = vunpack.c.l.b16 %v403
        %v444 = vunpack.c.l.b16 %v404
        %v445 = vpack.c.b16 %v441, %v440
        %v446 = vpack.c.b16 %v443, %v442
        %v447 = vpack.c.b16 %v444, %v444
        %v450 = vunpack.c.l.b16 %v398
        %v451 = vunpack.c.l.b16 %v399
        %v452 = vpack.c.b16 %v451, %v450
        %vm454 = vcmask 130048
        %v456 = vsel %vm454, %v445, 0
        %v459 = vsel %vm454, %v446, 0
        %v462 = vsel %vm454, %v447, 0
        %464 = vmatprep.subr.bf16.mxu0 0
        %465 = vmatpush1.bf16.msra.mxu0 0
        %466 = vmatprep.subr.bf16.mxu0 0
        %467 = vmatpush1.bf16.msra.mxu0 0
        %468 = vmatprep.subr.bf16.mxu0 0
        %469 = vmatpush1.bf16.msra.mxu0 0
        %470 = vmatprep.subr.bf16.mxu0 0
        %471 = vmatpush1.bf16.msra.mxu0 0
        %472 = vmatprep.subr.bf16.mxu0 0
        %473 = vmatpush1.bf16.msra.mxu0 0
        %474 = vmatprep.subr.bf16.mxu0 0
        %475 = vmatpush1.bf16.msra.mxu0 0
        %476 = vmatprep.subr.bf16.mxu0 0
        %477 = vmatpush1.bf16.msra.mxu0 0
        %478 = vmatprep.subr.bf16.mxu0 0
        %479 = vmatpush1.bf16.msra.mxu0 %v452
        %480 = vmatprep.subr.bf16.mxu0 0
        %481 = vmatpush2.bf16.msra.mxu0 0
        %482 = vmatprep.subr.bf16.mxu0 0
        %483 = vmatpush2.bf16.msra.mxu0 0
        %484 = vmatprep.subr.bf16.mxu0 0
        %485 = vmatpush2.bf16.msra.mxu0 0
        %486 = vmatprep.subr.bf16.mxu0 0
        %487 = vmatpush2.bf16.msra.mxu0 0
        %488 = vmatprep.subr.bf16.mxu0 0
        %489 = vmatpush2.bf16.msra.mxu0 0
        %490 = vmatprep.subr.bf16.mxu0 0
        %491 = vmatpush2.bf16.msra.mxu0 0
        %492 = vmatprep.subr.bf16.mxu0 0
        %493 = vmatpush2.bf16.msra.mxu0 0
        %494 = vmatprep.subr.bf16.mxu0 0
        %495 = vmatpush2.bf16.msra.mxu0 0
        %496 = vmatprep.mubr.bf16.mxu0 0
        %497 = vmatmul.mubr.bf16.gmra.mxu0 %v456
        %v498 = vpop.f32.mrf.mxu0
        %v499 = vadd.f32 %v413, %v498
        %v500 = vpop.f32.mrf.mxu0
        %v501 = vpop.f32.mrf.mxu0
        %v502 = vadd.f32 %v418, %v501
        %v503 = vpop.f32.mrf.mxu0
        %504 = vmatprep.mubr.bf16.mxu0 0
        %505 = vmatmul.mubr.bf16.gmra.mxu0 %v459
        %v506 = vpop.f32.mrf.mxu0
        %v507 = vadd.f32 %v423, %v506
        %v508 = vpop.f32.mrf.mxu0
        %v509 = vpop.f32.mrf.mxu0
        %v510 = vadd.f32 %v428, %v509
        %v511 = vpop.f32.mrf.mxu0
        %512 = vmatprep.mubr.bf16.mxu0 0
        %513 = vmatmul.mubr.bf16.gmra.mxu0 %v462
        %v514 = vpop.f32.mrf.mxu0
        %v515 = vadd.f32 %v433, %v514
        %v516 = vpop.f32.mrf.mxu0
        %v517 = vpop.f32.mrf.mxu0
        %v518 = vpop.f32.mrf.mxu0
        %519 = vdwg.mxu0
        %v520 = vmax.f32 %v499, 0.0
        %v521 = vmax.f32 %v502, 0.0
        %v522 = vmax.f32 %v507, 0.0
        %v523 = vmax.f32 %v510, 0.0
        %v524 = vld [vmem:[%s5] sm:$0xf]
        %v525 = vld [vmem:[%s5 + $0x4] sm:$0xf]
        %v526 = vld [vmem:[%s5 + $0x8] sm:$0xf]
        %v527 = vld [vmem:[%s5 + $0xc] sm:$0xf]
        %v528 = vpack.c.bf16 %v521, %v520
        %v529 = vpack.c.bf16 %v523, %v522
        %v530 = vld [vmem:[%s6] sm:$0xff]
        %v531 = vld [vmem:[%s6 + $0x8] sm:$0xff]
        %v532 = vld [vmem:[%s6 + $0x10] sm:$0xff]
        %v533 = vld [vmem:[%s6 + $0x18] sm:$0xff]
        %535 = vset.pattern.permute.xlu0 0
        %536 = vperm.xlu0 %535, %v530
        %v537 = vpop.permute.xlu0 %536
        %540 = vset.pattern.permute.xlu0 0
        %541 = vperm.xlu0 %540, %v531
        %v542 = vpop.permute.xlu0 %541
        %545 = vset.pattern.permute.xlu0 0
        %546 = vperm.xlu0 %545, %v532
        %v547 = vpop.permute.xlu0 %546
        %550 = vset.pattern.permute.xlu0 0
        %551 = vperm.xlu0 %550, %v533
        %v552 = vpop.permute.xlu0 %551
        %v558 = vunpack.c.l.b16 %v524
        %v559 = vunpack.c.l.b16 %v525
        %v560 = vunpack.c.l.b16 %v526
        %v561 = vunpack.c.l.b16 %v527
        %v562 = vpack.c.b16 %v559, %v558
        %v563 = vpack.c.b16 %v561, %v560
        %vm564 = vcmask 261120
        %v566 = vsel %vm564, %v562, 0
        %v569 = vsel %vm564, %v563, 0
        %571 = vmatprep.subr.bf16.mxu0 0
        %572 = vmatpush1.bf16.msra.mxu0 0
        %573 = vmatprep.subr.bf16.mxu0 0
        %574 = vmatpush1.bf16.msra.mxu0 0
        %575 = vmatprep.subr.bf16.mxu0 0
        %576 = vmatpush1.bf16.msra.mxu0 0
        %577 = vmatprep.subr.bf16.mxu0 0
        %578 = vmatpush1.bf16.msra.mxu0 0
        %579 = vmatprep.subr.bf16.mxu0 0
        %580 = vmatpush1.bf16.msra.mxu0 0
        %581 = vmatprep.subr.bf16.mxu0 0
        %582 = vmatpush1.bf16.msra.mxu0 0
        %583 = vmatprep.subr.bf16.mxu0 0
        %584 = vmatpush1.bf16.msra.mxu0 %v529
        %585 = vmatprep.subr.bf16.mxu0 0
        %586 = vmatpush1.bf16.msra.mxu0 %v528
        %587 = vmatprep.subr.bf16.mxu0 0
        %588 = vmatpush2.bf16.msra.mxu0 0
        %589 = vmatprep.subr.bf16.mxu0 0
        %590 = vmatpush2.bf16.msra.mxu0 0
        %591 = vmatprep.subr.bf16.mxu0 0
        %592 = vmatpush2.bf16.msra.mxu0 0
        %593 = vmatprep.subr.bf16.mxu0 0
        %594 = vmatpush2.bf16.msra.mxu0 0
        %595 = vmatprep.subr.bf16.mxu0 0
        %596 = vmatpush2.bf16.msra.mxu0 0
        %597 = vmatprep.subr.bf16.mxu0 0
        %598 = vmatpush2.bf16.msra.mxu0 0
        %599 = vmatprep.subr.bf16.mxu0 0
        %600 = vmatpush2.bf16.msra.mxu0 0
        %601 = vmatprep.subr.bf16.mxu0 0
        %602 = vmatpush2.bf16.msra.mxu0 0
        %603 = vmatprep.mubr.bf16.mxu0 0
        %604 = vmatmul.mubr.bf16.gmra.mxu0 %v566
        %v605 = vpop.f32.mrf.mxu0
        %v606 = vadd.f32 %v537, %v605
        %v607 = vpop.f32.mrf.mxu0
        %v608 = vpop.f32.mrf.mxu0
        %v609 = vadd.f32 %v542, %v608
        %v610 = vpop.f32.mrf.mxu0
        %611 = vmatprep.mubr.bf16.mxu0 0
        %612 = vmatmul.mubr.bf16.gmra.mxu0 %v569
        %v613 = vpop.f32.mrf.mxu0
        %v614 = vadd.f32 %v547, %v613
        %v615 = vpop.f32.mrf.mxu0
        %v616 = vpop.f32.mrf.mxu0
        %v617 = vadd.f32 %v552, %v616
        %v618 = vpop.f32.mrf.mxu0
        %619 = vdwg.mxu0
        %v620 = vmax.f32 %v606, 0.0
        %v621 = vmax.f32 %v609, 0.0
        %v622 = vmax.f32 %v614, 0.0
        %v623 = vmax.f32 %v617, 0.0
        %v624 = vld [vmem:[%s7] sm:$0xf]
        %v625 = vld [vmem:[%s7 + $0x4] sm:$0xf]
        %v626 = vpack.c.bf16 %v621, %v620
        %v627 = vpack.c.bf16 %v623, %v622
        %v628 = vld [vmem:[%s8] sm:$0xff]
        %v629 = vld [vmem:[%s8 + $0x8] sm:$0xff]
        %631 = vset.pattern.permute.xlu0 0
        %632 = vperm.xlu0 %631, %v628
        %v633 = vpop.permute.xlu0 %632
        %636 = vset.pattern.permute.xlu0 0
        %637 = vperm.xlu0 %636, %v629
        %v638 = vpop.permute.xlu0 %637
        %v642 = vunpack.c.l.b16 %v624
        %v643 = vunpack.c.l.b16 %v625
        %v644 = vpack.c.b16 %v643, %v642
        %v646 = vsel %vm564, %v644, 0
        %648 = vmatprep.subr.bf16.mxu0 0
        %649 = vmatpush1.bf16.msra.mxu0 0
        %650 = vmatprep.subr.bf16.mxu0 0
        %651 = vmatpush1.bf16.msra.mxu0 0
        %652 = vmatprep.subr.bf16.mxu0 0
        %653 = vmatpush1.bf16.msra.mxu0 0
        %654 = vmatprep.subr.bf16.mxu0 0
        %655 = vmatpush1.bf16.msra.mxu0 0
        %656 = vmatprep.subr.bf16.mxu0 0
        %657 = vmatpush1.bf16.msra.mxu0 0
        %658 = vmatprep.subr.bf16.mxu0 0
        %659 = vmatpush1.bf16.msra.mxu0 0
        %660 = vmatprep.subr.bf16.mxu0 0
        %661 = vmatpush1.bf16.msra.mxu0 %v627
        %662 = vmatprep.subr.bf16.mxu0 0
        %663 = vmatpush1.bf16.msra.mxu0 %v626
        %664 = vmatprep.subr.bf16.mxu0 0
        %665 = vmatpush2.bf16.msra.mxu0 0
        %666 = vmatprep.subr.bf16.mxu0 0
        %667 = vmatpush2.bf16.msra.mxu0 0
        %668 = vmatprep.subr.bf16.mxu0 0
        %669 = vmatpush2.bf16.msra.mxu0 0
        %670 = vmatprep.subr.bf16.mxu0 0
        %671 = vmatpush2.bf16.msra.mxu0 0
        %672 = vmatprep.subr.bf16.mxu0 0
        %673 = vmatpush2.bf16.msra.mxu0 0
        %674 = vmatprep.subr.bf16.mxu0 0
        %675 = vmatpush2.bf16.msra.mxu0 0
        %676 = vmatprep.subr.bf16.mxu0 0
        %677 = vmatpush2.bf16.msra.mxu0 0
        %678 = vmatprep.subr.bf16.mxu0 0
        %679 = vmatpush2.bf16.msra.mxu0 0
        %680 = vmatprep.mubr.bf16.mxu0 0
        %681 = vmatmul.mubr.bf16.gmra.mxu0 %v646
        %v682 = vpop.f32.mrf.mxu0
        %v683 = vadd.f32 %v633, %v682
        %v684 = vpop.f32.mrf.mxu0
        %v685 = vpop.f32.mrf.mxu0
        %v686 = vadd.f32 %v638, %v685
        %v687 = vpop.f32.mrf.mxu0
        %688 = vdwg.mxu0
        %v689 = vld [vmem:[%s396] sm:$0xf]
        %v690 = vunpack.c.l.bf16 %v689
        %v691 = vmul.f32 %v686, %v690
        %v692 = vadd.f32 %v683, %v691
        %v693 = vmul.f32 %v515, %v692
        %vm694 = vcmask 64512
        %v695 = vsel %vm694, %v693, 0.0
        %v696 = vrot.slane %v695, 4
        %v697 = vadd.f32 %v695, %v696
        %v698 = vrot.slane %v697, 2
        %v699 = vadd.f32 %v697, %v698
        %v700 = vrot.slane %v699, 1
        %v701 = vadd.f32 %v699, %v700
        %v702 = vmul.f32 %v701, 0.125
        %s703 = smul.u32 %s29, 8
        %v704 = vlaneseq
        %v705 = vand.u32 %v704, 127
        %v706 = vstv %s703
        %v707 = vadd.s32 %v706, %v705
        %s708 = sld [smem:[#allocation2 + %s28]]
        %v709 = vstv %s708
        %vm710 = vcmp.lt.s32.totalorder %v707, %v709
        %v711 = vsel %vm710, %v702, 0.0
        %vm712 = vcmask 57344
        %713 = vst.msk [vmem:[%s381] sm:$0x1] %vm712, %v711
        %s714 = sand.u32 %s249, 1
        %s715 = scalar_lea.sflag [#allocation3], %s714
        %s716 = sand.u32 %s249, 1
        %s717 = scalar_lea.vmem [#allocation5], %s716
        // Predicated region
        $region61: #{tpu_custom_call.1} parent=55 // pred_check
          %p718 = pneg %p259
        $region62: #{tpu_custom_call.1} parent=55 // pred_check_branch
          %720 = sbr.rel (%p718) target = $region64
        $region63: #{tpu_custom_call.1} parent=55 // pred_region
          %s722 = ssub.s32 16, 16
          %723 = vsyncadd %s715, %s722
          %s724 = sadd.s32 %s29, %s28
          %s725 = smul.addr %s724, 16
          %s726 = scalar_lea.hbm %s9, %s725
          %s728 = sshll.u32 %s717, 4
          %s729 = int_to_ptr.vmem [resolvable:$true] %s728
          %731 = dma.vmem_to_hbm [thread:$0]  %s729, 16, %s726, %s715
        $region64: #{tpu_custom_call.1} parent=55 // pred_fallthru
          _
      $region56: #{tpu_custom_call.1} parent=5 // pred_fallthru
        _
      %p732 = scmp.le.s32.totalorder 2, %s19
      // Predicated region
      $region65: #{tpu_custom_call.1} parent=5 // pred_check
        %p733 = pneg %p732
      $region66: #{tpu_custom_call.1} parent=5 // pred_check_branch
        %735 = sbr.rel (%p733) target = $region68
      $region67: #{tpu_custom_call.1} parent=5 // pred_region
        %s736 = ssub.s32 %s19, 2
        // Predicated region
        $region69: #{tpu_custom_call.1} parent=67 // pred_check
          %p737 = pneg %p265
        $region70: #{tpu_custom_call.1} parent=67 // pred_check_branch
          %739 = sbr.rel (%p737) target = $region72
        $region71: #{tpu_custom_call.1} parent=67 // pred_region
          %s740 = sand.u32 %s250, 1
          %s741 = scalar_lea.sflag [#allocation3], %s740
          %s742 = sand.u32 %s250, 1
          %s743 = scalar_lea.vmem [#allocation5], %s742
          %744 = dma.done %s741, 16
        $region72: #{tpu_custom_call.1} parent=67 // pred_fallthru
          _
      $region68: #{tpu_custom_call.1} parent=5 // pred_fallthru
        _
    $region6: #{tpu_custom_call.1} parent=1 // loop_footer
      %s23 = sadd.s32 1, %s19
    $region7: #{tpu_custom_call.1} parent=1 // loop_footer_branch
      %18 = sbr.rel target = $region3
    $region8: #{tpu_custom_call.1} parent=1 // loop_exit
      _
    %745 = vsyncpa [#allocation3], 1
    %s746 = scalar_lea.sflag [#allocation3], 1
    %747 = vsyncpa %s746, 1
    %748 = vsyncpa [#allocation4], 1
    %s749 = scalar_lea.sflag [#allocation4], 1
    %750 = vsyncpa %s749, 1

</llo_original>
